<compile_context>
chip_gen: v6e
topology: v6e:2x2x1
jax: 0.10.0
libtpu: 0.0.40
codegen_flags: <defaults>
</compile_context>

<pallas_src>
import functools

import jax
import jax.numpy as jnp
import numpy as np
from jax import lax
from jax.experimental import pallas as pl
from jax.experimental.pallas import tpu as pltpu


def _bottleneck_kernel(x_ref, w1_ref, b1_ref, w2_ref, b2_ref,
                       w3_ref, b3_ref, *rest, remap, H, WC):
    if remap:
        wr_ref, br_ref, o_ref, pad_ref = rest
    else:
        o_ref, pad_ref = rest

    # x block: (1, H, W*Cin) bf16, already lane-dense (host reshaped NHWC).
    x = x_ref[0]                                            # (H, W*Cin)

    # conv1 (1x1, BN scale folded into weights) + bias + ReLU.
    # Single MXU matmul with N = W*C (block-diagonal expanded weight).
    t1 = jnp.dot(x, w1_ref[...], preferred_element_type=jnp.float32)
    t1 = jnp.maximum(t1 + b1_ref[...], 0.0)                 # (H, W*C) f32

    # Row-padded scratch for the 3x3 conv.  W-direction padding is folded into
    # the banded weights, so only the top/bottom halo rows must be zero.
    # Zero just those two rows every step (cheap; correct even when the grid
    # is sharded across TensorCores, since scratch is per-core and persistent).
    pad_ref[0:1, :] = jnp.zeros((1, WC), pad_ref.dtype)
    pad_ref[H + 1:H + 2, :] = jnp.zeros((1, WC), pad_ref.dtype)
    pad_ref[1:H + 1, :] = t1

    # conv2 (3x3, pad=1, BN scale folded): 3 banded matmuls, one per ky.
    # K = N = W*C; no per-tap window slicing / relayout; f32 accumulation.
    acc = jnp.zeros((H, WC), jnp.float32)
    for dy in range(3):
        lhs = pad_ref[dy:dy + H, :].astype(jnp.bfloat16)    # (H, W*C)
        acc = acc + jnp.dot(lhs, w2_ref[dy],
                            preferred_element_type=jnp.float32)
    t2 = jnp.maximum(acc + b2_ref[...], 0.0).astype(jnp.bfloat16)

    # conv3 (1x1, BN scale folded) + bias.
    t3 = jnp.dot(t2, w3_ref[...], preferred_element_type=jnp.float32)
    t3 = t3 + b3_ref[...]

    # Residual branch.
    if remap:
        idn = jnp.dot(x, wr_ref[...],
                      preferred_element_type=jnp.float32) + br_ref[...]
    else:
        idn = x.astype(jnp.float32)

    # Final ReLU; lane-dense (H, W*C) store.
    o_ref[0] = jnp.maximum(t3 + idn, 0.0)


def bottleneck_pallas_nhwc(x_nhwc, params, *, remap):
    """x_nhwc: (N, H, W, Cin) float32. Returns (N, H, W, Cout) float32."""
    N, H, W, Cin = x_nhwc.shape
    C = params["w1"].shape[1]
    assert remap or Cin == C, "remap=False requires in_channels == out_channels"
    WC, WCin = W * C, W * Cin
    f32, bf16 = jnp.float32, jnp.bfloat16

    # ---- host-side weight preparation (once per call; cache in a real model) -
    eyeW = jnp.eye(W, dtype=f32)

    # Fold BN scale into conv weights; expand 1x1 convs to block-diagonal
    # (W*Cin, W*C) matrices so the matmuls run in the lane-dense layout.
    w1_bd = jnp.kron(eyeW, params["w1"] * params["s1"]).astype(bf16)
    w3_bd = jnp.kron(eyeW, params["w3"] * params["s3"]).astype(bf16)

    # 3x3 conv: fold the 3 x-direction taps (and the zero padding in W) into
    # three banded (W*C, W*C) matrices, one per ky.
    w2s = params["w2"] * params["s2"]                       # (3, 3, C, C)
    bands = []
    for dy in range(3):
        m = jnp.zeros((WC, WC), f32)
        for dx in range(3):
            m = m + jnp.kron(jnp.eye(W, k=1 - dx, dtype=f32), w2s[dy, dx])
        bands.append(m)
    w2_band = jnp.stack(bands).astype(bf16)                 # (3, W*C, W*C)

    # Biases tiled to the lane-dense layout.
    b1_t = jnp.tile(params["b1"], (1, W)).astype(f32)       # (1, W*C)
    b2_t = jnp.tile(params["b2"], (1, W)).astype(f32)
    b3_t = jnp.tile(params["b3"], (1, W)).astype(f32)

    # Input as lane-dense (N, H, W*Cin) bf16 (free view of contiguous NHWC).
    x2d = x_nhwc.reshape(N, H, WCin).astype(bf16)

    full = lambda shape: pl.BlockSpec(shape, lambda n: (0,) * len(shape))
    in_specs = [
        pl.BlockSpec((1, H, WCin), lambda n: (n, 0, 0)),    # x
        full((WCin, WC)), full((1, WC)),                    # w1, b1
        full((3, WC, WC)), full((1, WC)),                   # w2 bands, b2
        full((WC, WC)), full((1, WC)),                      # w3, b3
    ]
    args = [x2d, w1_bd, b1_t, w2_band, b2_t, w3_bd, b3_t]
    if remap:
        wr_bd = jnp.kron(eyeW, params["wr"]).astype(bf16)
        br_t = jnp.tile(params["br"], (1, W)).astype(f32)
        in_specs += [full((WCin, WC)), full((1, WC))]
        args += [wr_bd, br_t]

    kernel = functools.partial(_bottleneck_kernel, remap=remap, H=H, WC=WC)

    out = pl.pallas_call(
        kernel,
        out_shape=jax.ShapeDtypeStruct((N, H, WC), jnp.float32),
        grid_spec=pltpu.PrefetchScalarGridSpec(
            num_scalar_prefetch=0,
            grid=(N,),
            in_specs=in_specs,
            out_specs=pl.BlockSpec((1, H, WC), lambda n: (n, 0, 0)),
            # Row-padded scratch (f32 to keep offset-row slices trivially
            # lowerable; cast to bf16 at the matmul inputs).
            scratch_shapes=[pltpu.VMEM((H + 2, WC), jnp.float32)],
        ),
        compiler_params=pltpu.CompilerParams(
            dimension_semantics=("parallel",)),
    )(*args)

    return out.reshape(N, H, W, C)


def bottleneck_pallas(x_nchw, params, *, remap):
    """PyTorch-interface wrapper: (N, Cin, H, W) -> (N, Cout, H, W).

    NOTE: the NCHW<->NHWC transposes below are HBM-bound XLA ops; inside a
    full network keep activations NHWC and call bottleneck_pallas_nhwc.
    """
    x_nhwc = jnp.transpose(x_nchw, (0, 2, 3, 1))
    out = bottleneck_pallas_nhwc(x_nhwc, params, remap=remap)
    return jnp.transpose(out, (0, 3, 1, 2))


def bottleneck_reference(x_nchw, params, *, remap):
    """Pure-JAX f32 reference (NHWC convs via lax)."""
    x = jnp.transpose(x_nchw, (0, 2, 3, 1))
    dn = ("NHWC", "HWIO", "NHWC")

    def conv1x1(h, w):
        return lax.conv_general_dilated(h, w[None, None], (1, 1), "VALID",
                                        dimension_numbers=dn)

    h = conv1x1(x, params["w1"]) * params["s1"] + params["b1"]
    h = jnp.maximum(h, 0.0)
    h = lax.conv_general_dilated(h, params["w2"], (1, 1), ((1, 1), (1, 1)),
                                 dimension_numbers=dn)
    h = jnp.maximum(h * params["s2"] + params["b2"], 0.0)
    h = conv1x1(h, params["w3"]) * params["s3"] + params["b3"]
    idn = conv1x1(x, params["wr"]) + params["br"] if remap else x
    out = jnp.maximum(h + idn, 0.0)
    return jnp.transpose(out, (0, 3, 1, 2))


def make_params(key, in_channels, out_channels):
    """Deterministic init. Conv weights stored as (Cin, Cout) / HWIO;
    BatchNorm folded to per-channel scale & bias (inference mode)."""
    Cin, C = in_channels, out_channels
    ks = jax.random.split(key, 10)
    eps = 1e-5

    def bn_fold(kg, kb, km, kv, c):
        gamma = 1.0 + 0.1 * jax.random.normal(kg, (c,), jnp.float32)
        beta = 0.1 * jax.random.normal(kb, (c,), jnp.float32)
        mean = 0.05 * jax.random.normal(km, (c,), jnp.float32)
        var = jnp.abs(jax.random.normal(kv, (c,), jnp.float32)) + 0.5
        scale = gamma / jnp.sqrt(var + eps)
        bias = beta - mean * scale
        return scale[None, :], bias[None, :]

    s1, b1 = bn_fold(*jax.random.split(ks[3], 4), C)
    s2, b2 = bn_fold(*jax.random.split(ks[4], 4), C)
    s3, b3 = bn_fold(*jax.random.split(ks[5], 4), C)

    return dict(
        w1=0.2 * jax.random.normal(ks[0], (Cin, C), jnp.float32),
        s1=s1, b1=b1,
        w2=0.1 * jax.random.normal(ks[1], (3, 3, C, C), jnp.float32),
        s2=s2, b2=b2,
        w3=0.2 * jax.random.normal(ks[2], (C, C), jnp.float32),
        s3=s3, b3=b3,
        wr=0.2 * jax.random.normal(ks[6], (Cin, C), jnp.float32),
        br=0.1 * jax.random.normal(ks[7], (1, C), jnp.float32),
    )


if __name__ == "__main__":
    key = jax.random.PRNGKey(0)
    k_x, k_p = jax.random.split(key)

    N, Cin, Cout, H, W = 2, 4, 8, 16, 16   # Cin != Cout -> remap path
    remap = Cin != Cout

    x = jax.random.normal(k_x, (N, Cin, H, W), jnp.float32)
    params = make_params(k_p, Cin, Cout)

    out = bottleneck_pallas(x, params, remap=remap)
    out = jax.block_until_ready(out)

    ref = jax.block_until_ready(bottleneck_reference(x, params, remap=remap))
    # bf16 matmul inputs vs. f32 reference -> slightly looser tolerance.
    np.testing.assert_allclose(np.asarray(out), np.asarray(ref),
                               rtol=2e-2, atol=2e-2)
    assert out.shape == (N, Cout, H, W)
    print("KERNEL_OK")
</pallas_src>

<mosaic_0001>
module attributes {stable_mosaic.version = 11 : i64} {
  func.func @_bottleneck_kernel(%arg0: i32, %arg1: memref<1x16x64xbf16, #tpu.memory_space<vmem>>, %arg2: memref<64x128xbf16, #tpu.memory_space<vmem>>, %arg3: memref<1x128xf32, #tpu.memory_space<vmem>>, %arg4: memref<3x128x128xbf16, #tpu.memory_space<vmem>>, %arg5: memref<1x128xf32, #tpu.memory_space<vmem>>, %arg6: memref<128x128xbf16, #tpu.memory_space<vmem>>, %arg7: memref<1x128xf32, #tpu.memory_space<vmem>>, %arg8: memref<64x128xbf16, #tpu.memory_space<vmem>>, %arg9: memref<1x128xf32, #tpu.memory_space<vmem>>, %arg10: memref<1x16x128xf32, #tpu.memory_space<vmem>>, %arg11: memref<18x128xf32, #tpu.memory_space<vmem>>) attributes {dimension_semantics = [#tpu.dimension_semantics<parallel>], iteration_bounds = array<i64: 2>, scalar_prefetch = 0 : i64, scratch_operands = 1 : i64, tpu.core_type = #tpu.core_type<tc>, window_params = [{transform_indices = @transform_0, window_bounds = array<i64: 1, 16, 64>}, {pipeline_mode = #tpu.pipeline_mode<synchronous>, transform_indices = @transform_1, window_bounds = array<i64: 64, 128>}, {pipeline_mode = #tpu.pipeline_mode<synchronous>, transform_indices = @transform_2, window_bounds = array<i64: 1, 128>}, {pipeline_mode = #tpu.pipeline_mode<synchronous>, transform_indices = @transform_3, window_bounds = array<i64: 3, 128, 128>}, {pipeline_mode = #tpu.pipeline_mode<synchronous>, transform_indices = @transform_4, window_bounds = array<i64: 1, 128>}, {pipeline_mode = #tpu.pipeline_mode<synchronous>, transform_indices = @transform_5, window_bounds = array<i64: 128, 128>}, {pipeline_mode = #tpu.pipeline_mode<synchronous>, transform_indices = @transform_6, window_bounds = array<i64: 1, 128>}, {pipeline_mode = #tpu.pipeline_mode<synchronous>, transform_indices = @transform_7, window_bounds = array<i64: 64, 128>}, {pipeline_mode = #tpu.pipeline_mode<synchronous>, transform_indices = @transform_8, window_bounds = array<i64: 1, 128>}, {transform_indices = @transform_9, window_bounds = array<i64: 1, 16, 128>}]} {
    %c0 = arith.constant 0 : index
    %c0_0 = arith.constant 0 : index
    %c0_1 = arith.constant 0 : index
    %0 = vector.load %arg1[%c0, %c0_0, %c0_1] : memref<1x16x64xbf16, #tpu.memory_space<vmem>>, vector<1x16x64xbf16>
    %1 = vector.shape_cast %0 : vector<1x16x64xbf16> to vector<16x64xbf16>
    %c0_2 = arith.constant 0 : index
    %c0_3 = arith.constant 0 : index
    %2 = vector.load %arg2[%c0_2, %c0_3] : memref<64x128xbf16, #tpu.memory_space<vmem>>, vector<64x128xbf16>
    %cst = arith.constant dense<0.000000e+00> : vector<16x128xf32>
    %3 = tpu.matmul %1, %2, %cst {dimension_numbers = #tpu.dot_dimension_numbers<[1], [0], [0], [1], [0, 0, 1, 1], [], []>} : vector<16x64xbf16>, vector<64x128xbf16>, vector<16x128xf32> -> vector<16x128xf32>
    %c0_4 = arith.constant 0 : index
    %c0_5 = arith.constant 0 : index
    %4 = vector.load %arg3[%c0_4, %c0_5] : memref<1x128xf32, #tpu.memory_space<vmem>>, vector<1x128xf32>
    %5 = vector.broadcast %4 : vector<1x128xf32> to vector<16x128xf32>
    %6 = arith.addf %3, %5 : vector<16x128xf32>
    %cst_6 = arith.constant 0.000000e+00 : f32
    %7 = vector.broadcast %cst_6 : f32 to vector<16x128xf32>
    %8 = arith.maximumf %6, %7 : vector<16x128xf32>
    %cst_7 = arith.constant 0.000000e+00 : f32
    %9 = vector.broadcast %cst_7 : f32 to vector<1x128xf32>
    %c0_8 = arith.constant 0 : index
    %c0_9 = arith.constant 0 : index
    %10 = vector.load %arg11[%c0_8, %c0_9] : memref<18x128xf32, #tpu.memory_space<vmem>>, vector<1x128xf32>
    tpu.vector_store %arg11[%c0_8, %c0_9], %9 {strides = array<i32>} : memref<18x128xf32, #tpu.memory_space<vmem>>, vector<1x128xf32>,
    %cst_10 = arith.constant 0.000000e+00 : f32
    %11 = vector.broadcast %cst_10 : f32 to vector<1x128xf32>
    %c17 = arith.constant 17 : index
    %c0_11 = arith.constant 0 : index
    %12 = vector.load %arg11[%c17, %c0_11] : memref<18x128xf32, #tpu.memory_space<vmem>>, vector<1x128xf32>
    tpu.vector_store %arg11[%c17, %c0_11], %11 {strides = array<i32>} : memref<18x128xf32, #tpu.memory_space<vmem>>, vector<1x128xf32>,
    %c1 = arith.constant 1 : index
    %c0_12 = arith.constant 0 : index
    %13 = vector.load %arg11[%c1, %c0_12] : memref<18x128xf32, #tpu.memory_space<vmem>>, vector<16x128xf32>
    tpu.vector_store %arg11[%c1, %c0_12], %8 {strides = array<i32>} : memref<18x128xf32, #tpu.memory_space<vmem>>, vector<16x128xf32>,
    %cst_13 = arith.constant 0.000000e+00 : f32
    %14 = vector.broadcast %cst_13 : f32 to vector<16x128xf32>
    %c0_14 = arith.constant 0 : index
    %c0_15 = arith.constant 0 : index
    %15 = vector.load %arg11[%c0_14, %c0_15] : memref<18x128xf32, #tpu.memory_space<vmem>>, vector<16x128xf32>
    %16 = arith.truncf %15 : vector<16x128xf32> to vector<16x128xbf16>
    %c0_16 = arith.constant 0 : index
    %c0_17 = arith.constant 0 : index
    %c0_18 = arith.constant 0 : index
    %17 = vector.load %arg4[%c0_16, %c0_17, %c0_18] : memref<3x128x128xbf16, #tpu.memory_space<vmem>>, vector<1x128x128xbf16>
    %18 = vector.shape_cast %17 : vector<1x128x128xbf16> to vector<128x128xbf16>
    %cst_19 = arith.constant dense<0.000000e+00> : vector<16x128xf32>
    %19 = tpu.matmul %16, %18, %cst_19 {dimension_numbers = #tpu.dot_dimension_numbers<[1], [0], [0], [1], [0, 0, 1, 1], [], []>} : vector<16x128xbf16>, vector<128x128xbf16>, vector<16x128xf32> -> vector<16x128xf32>
    %20 = arith.addf %14, %19 : vector<16x128xf32>
    %c1_20 = arith.constant 1 : index
    %c0_21 = arith.constant 0 : index
    %21 = vector.load %arg11[%c1_20, %c0_21] : memref<18x128xf32, #tpu.memory_space<vmem>>, vector<16x128xf32>
    %22 = arith.truncf %21 : vector<16x128xf32> to vector<16x128xbf16>
    %c1_22 = arith.constant 1 : index
    %c0_23 = arith.constant 0 : index
    %c0_24 = arith.constant 0 : index
    %23 = vector.load %arg4[%c1_22, %c0_23, %c0_24] : memref<3x128x128xbf16, #tpu.memory_space<vmem>>, vector<1x128x128xbf16>
    %24 = vector.shape_cast %23 : vector<1x128x128xbf16> to vector<128x128xbf16>
    %cst_25 = arith.constant dense<0.000000e+00> : vector<16x128xf32>
    %25 = tpu.matmul %22, %24, %cst_25 {dimension_numbers = #tpu.dot_dimension_numbers<[1], [0], [0], [1], [0, 0, 1, 1], [], []>} : vector<16x128xbf16>, vector<128x128xbf16>, vector<16x128xf32> -> vector<16x128xf32>
    %26 = arith.addf %20, %25 : vector<16x128xf32>
    %c2 = arith.constant 2 : index
    %c0_26 = arith.constant 0 : index
    %27 = vector.load %arg11[%c2, %c0_26] : memref<18x128xf32, #tpu.memory_space<vmem>>, vector<16x128xf32>
    %28 = arith.truncf %27 : vector<16x128xf32> to vector<16x128xbf16>
    %c2_27 = arith.constant 2 : index
    %c0_28 = arith.constant 0 : index
    %c0_29 = arith.constant 0 : index
    %29 = vector.load %arg4[%c2_27, %c0_28, %c0_29] : memref<3x128x128xbf16, #tpu.memory_space<vmem>>, vector<1x128x128xbf16>
    %30 = vector.shape_cast %29 : vector<1x128x128xbf16> to vector<128x128xbf16>
    %cst_30 = arith.constant dense<0.000000e+00> : vector<16x128xf32>
    %31 = tpu.matmul %28, %30, %cst_30 {dimension_numbers = #tpu.dot_dimension_numbers<[1], [0], [0], [1], [0, 0, 1, 1], [], []>} : vector<16x128xbf16>, vector<128x128xbf16>, vector<16x128xf32> -> vector<16x128xf32>
    %32 = arith.addf %26, %31 : vector<16x128xf32>
    %c0_31 = arith.constant 0 : index
    %c0_32 = arith.constant 0 : index
    %33 = vector.load %arg5[%c0_31, %c0_32] : memref<1x128xf32, #tpu.memory_space<vmem>>, vector<1x128xf32>
    %34 = vector.broadcast %33 : vector<1x128xf32> to vector<16x128xf32>
    %35 = arith.addf %32, %34 : vector<16x128xf32>
    %cst_33 = arith.constant 0.000000e+00 : f32
    %36 = vector.broadcast %cst_33 : f32 to vector<16x128xf32>
    %37 = arith.maximumf %35, %36 : vector<16x128xf32>
    %38 = arith.truncf %37 : vector<16x128xf32> to vector<16x128xbf16>
    %c0_34 = arith.constant 0 : index
    %c0_35 = arith.constant 0 : index
    %39 = vector.load %arg6[%c0_34, %c0_35] : memref<128x128xbf16, #tpu.memory_space<vmem>>, vector<128x128xbf16>
    %cst_36 = arith.constant dense<0.000000e+00> : vector<16x128xf32>
    %40 = tpu.matmul %38, %39, %cst_36 {dimension_numbers = #tpu.dot_dimension_numbers<[1], [0], [0], [1], [0, 0, 1, 1], [], []>} : vector<16x128xbf16>, vector<128x128xbf16>, vector<16x128xf32> -> vector<16x128xf32>
    %c0_37 = arith.constant 0 : index
    %c0_38 = arith.constant 0 : index
    %41 = vector.load %arg7[%c0_37, %c0_38] : memref<1x128xf32, #tpu.memory_space<vmem>>, vector<1x128xf32>
    %42 = vector.broadcast %41 : vector<1x128xf32> to vector<16x128xf32>
    %43 = arith.addf %40, %42 : vector<16x128xf32>
    %c0_39 = arith.constant 0 : index
    %c0_40 = arith.constant 0 : index
    %44 = vector.load %arg8[%c0_39, %c0_40] : memref<64x128xbf16, #tpu.memory_space<vmem>>, vector<64x128xbf16>
    %cst_41 = arith.constant dense<0.000000e+00> : vector<16x128xf32>
    %45 = tpu.matmul %1, %44, %cst_41 {dimension_numbers = #tpu.dot_dimension_numbers<[1], [0], [0], [1], [0, 0, 1, 1], [], []>} : vector<16x64xbf16>, vector<64x128xbf16>, vector<16x128xf32> -> vector<16x128xf32>
    %c0_42 = arith.constant 0 : index
    %c0_43 = arith.constant 0 : index
    %46 = vector.load %arg9[%c0_42, %c0_43] : memref<1x128xf32, #tpu.memory_space<vmem>>, vector<1x128xf32>
    %47 = vector.broadcast %46 : vector<1x128xf32> to vector<16x128xf32>
    %48 = arith.addf %45, %47 : vector<16x128xf32>
    %49 = arith.addf %43, %48 : vector<16x128xf32>
    %cst_44 = arith.constant 0.000000e+00 : f32
    %50 = vector.broadcast %cst_44 : f32 to vector<16x128xf32>
    %51 = arith.maximumf %49, %50 : vector<16x128xf32>
    %c0_45 = arith.constant 0 : index
    %c0_46 = arith.constant 0 : index
    %c0_47 = arith.constant 0 : index
    %52 = vector.load %arg10[%c0_45, %c0_46, %c0_47] : memref<1x16x128xf32, #tpu.memory_space<vmem>>, vector<1x16x128xf32>
    %53 = vector.shape_cast %52 : vector<1x16x128xf32> to vector<16x128xf32>
    %54 = vector.shape_cast %51 : vector<16x128xf32> to vector<1x16x128xf32>
    tpu.vector_store %arg10[%c0_45, %c0_46, %c0_47], %54 {strides = array<i32>} : memref<1x16x128xf32, #tpu.memory_space<vmem>>, vector<1x16x128xf32>,
    return
  }
  func.func @transform_0(%arg0: i32) -> (i32, i32, i32) {
    %c0_i32 = arith.constant 0 : i32
    %c0_i32_0 = arith.constant 0 : i32
    %c0_i32_1 = arith.constant 0 : i32
    return %arg0, %c0_i32, %c0_i32_0 : i32, i32, i32
  }
  func.func @transform_1(%arg0: i32) -> (i32, i32) {
    %c0_i32 = arith.constant 0 : i32
    %c0_i32_0 = arith.constant 0 : i32
    %c0_i32_1 = arith.constant 0 : i32
    return %c0_i32, %c0_i32_0 : i32, i32
  }
  func.func @transform_2(%arg0: i32) -> (i32, i32) {
    %c0_i32 = arith.constant 0 : i32
    %c0_i32_0 = arith.constant 0 : i32
    %c0_i32_1 = arith.constant 0 : i32
    return %c0_i32, %c0_i32_0 : i32, i32
  }
  func.func @transform_3(%arg0: i32) -> (i32, i32, i32) {
    %c0_i32 = arith.constant 0 : i32
    %c0_i32_0 = arith.constant 0 : i32
    %c0_i32_1 = arith.constant 0 : i32
    %c0_i32_2 = arith.constant 0 : i32
    return %c0_i32, %c0_i32_0, %c0_i32_1 : i32, i32, i32
  }
  func.func @transform_4(%arg0: i32) -> (i32, i32) {
    %c0_i32 = arith.constant 0 : i32
    %c0_i32_0 = arith.constant 0 : i32
    %c0_i32_1 = arith.constant 0 : i32
    return %c0_i32, %c0_i32_0 : i32, i32
  }
  func.func @transform_5(%arg0: i32) -> (i32, i32) {
    %c0_i32 = arith.constant 0 : i32
    %c0_i32_0 = arith.constant 0 : i32
    %c0_i32_1 = arith.constant 0 : i32
    return %c0_i32, %c0_i32_0 : i32, i32
  }
  func.func @transform_6(%arg0: i32) -> (i32, i32) {
    %c0_i32 = arith.constant 0 : i32
    %c0_i32_0 = arith.constant 0 : i32
    %c0_i32_1 = arith.constant 0 : i32
    return %c0_i32, %c0_i32_0 : i32, i32
  }
  func.func @transform_7(%arg0: i32) -> (i32, i32) {
    %c0_i32 = arith.constant 0 : i32
    %c0_i32_0 = arith.constant 0 : i32
    %c0_i32_1 = arith.constant 0 : i32
    return %c0_i32, %c0_i32_0 : i32, i32
  }
  func.func @transform_8(%arg0: i32) -> (i32, i32) {
    %c0_i32 = arith.constant 0 : i32
    %c0_i32_0 = arith.constant 0 : i32
    %c0_i32_1 = arith.constant 0 : i32
    return %c0_i32, %c0_i32_0 : i32, i32
  }
  func.func @transform_9(%arg0: i32) -> (i32, i32, i32) {
    %c0_i32 = arith.constant 0 : i32
    %c0_i32_0 = arith.constant 0 : i32
    %c0_i32_1 = arith.constant 0 : i32
    return %arg0, %c0_i32, %c0_i32_0 : i32, i32, i32
  }
}

</mosaic_0001>

<llo_original>
// kernel: tpu_custom_call.1
$region0: #{tpu_custom_call.1}
  #allocation0 [shape = 'u32[]', space=smem, size = 0x4, offset = 0x4, fixed_abs, tag = 'smem constant byte address 0x4 - core index']
  #allocation1 [shape = 'u32[144,128]{1,0:T(1,128)}', space=vmem, size = 0x12000, scoped, tag = 'internal scratch']
  #allocation2 [shape = 'f32[18,128]{1,0:T(8,128)}', space=vmem, size = 0x3000, scoped, tag = 'scratch operand']
  %s0 = inlined_call_operand.hbm [shape: bf16[2,16,64], index: 0, kind: input, shape index: {}]
  %s1 = inlined_call_operand.hbm [shape: bf16[64,128], index: 1, kind: input, shape index: {}]
  %s2 = inlined_call_operand.vmem [shape: f32[1,128], index: 2, kind: input, shape index: {}]
  %s3 = inlined_call_operand.hbm [shape: bf16[3,128,128], index: 3, kind: input, shape index: {}]
  %s4 = inlined_call_operand.vmem [shape: f32[1,128], index: 4, kind: input, shape index: {}]
  %s5 = inlined_call_operand.hbm [shape: bf16[128,128], index: 5, kind: input, shape index: {}]
  %s6 = inlined_call_operand.vmem [shape: f32[1,128], index: 6, kind: input, shape index: {}]
  %s7 = inlined_call_operand.hbm [shape: bf16[64,128], index: 7, kind: input, shape index: {}]
  %s8 = inlined_call_operand.vmem [shape: f32[1,128], index: 8, kind: input, shape index: {}]
  %s9 = inlined_call_operand.hbm [shape: f32[2,16,128], index: 9, kind: output, shape index: {}]
  %s10 = sld [smem:[#allocation0]]
  $region89: #{tpu_custom_call.1} parent=0
    _
  %s12 = ssub.s32 1, %s10
  %s13 = scalar_select 0, %s12, %s10
  $region1: #{tpu_custom_call.1} parent=0
    #allocation3 [shape = 'u8[8192]{0}', space=vmem, size = 0x2000, scoped, tag = 'input window, operand 0']
    #allocation4 [shape = 's32[2]{0}', space=sflag, size = 0x8, scoped, tag = 'scoped memory for tpu_custom_call.1']
    #allocation5 [shape = 's32[2]{0}', space=sflag, size = 0x8, scoped, tag = 'scoped memory for tpu_custom_call.1']
    #allocation6 [shape = 'u8[16384]{0}', space=vmem, size = 0x4000, scoped, tag = 'input window, operand 1, single buffered']
    #allocation7 [shape = 's32[1]{0}', space=sflag, size = 0x4, scoped, tag = 'scoped memory for tpu_custom_call.1']
    #allocation8 [shape = 'u8[98304]{0}', space=vmem, size = 0x18000, scoped, tag = 'input window, operand 3, single buffered']
    #allocation9 [shape = 'u8[32768]{0}', space=vmem, size = 0x8000, scoped, tag = 'input window, operand 5, single buffered']
    #allocation10 [shape = 's32[1]{0}', space=sflag, size = 0x4, scoped, tag = 'scoped memory for tpu_custom_call.1']
    #allocation11 [shape = 'u8[16384]{0}', space=vmem, size = 0x4000, scoped, tag = 'input window, operand 7, single buffered']
    #allocation12 [shape = 'u8[16384]{0}', space=vmem, size = 0x4000, scoped, tag = 'output window, operand 0']
    %14 = vsyncpa [#allocation4], 0
    %s15 = scalar_lea.sflag [#allocation4], 1
    %16 = vsyncpa %s15, 0
    %17 = vsyncpa [#allocation7], 0
    %18 = vsyncpa [#allocation10], 0
    %19 = vsyncpa [#allocation5], 0
    %s20 = scalar_lea.sflag [#allocation5], 1
    %21 = vsyncpa %s20, 0
    loop: start=0, step=1, limit=4
    $region2: #{tpu_custom_call.1} parent=1 // loop_pre_header
      _
    $region3: #{tpu_custom_call.1} parent=1 // loop_header
      %s23 = sphi 0, %s27
      %p24 = scmp.ge.s32.totalorder %s23, 4
      %s33 = sphi 0, %s35
      %s36 = sphi 0, %s33
      %s37 = sphi 0, %s36
      %s53 = sphi 0, %s37
      %s57 = sphi 0, %s57
      %s59 = sphi 0, %s57
      %s60 = sphi 0, %s59
      %s74 = sphi 0, %s60
      %s78 = sphi 0, %s78
      %s80 = sphi 0, %s78
      %s81 = sphi 0, %s80
      %s95 = sphi 0, %s81
      %s99 = sphi 0, %s99
      %s101 = sphi 0, %s99
      %s102 = sphi 0, %s101
      %s116 = sphi 0, %s102
      %s120 = sphi 0, %s120
      %s122 = sphi 0, %s120
      %s123 = sphi 0, %s122
      %s137 = sphi 0, %s123
      %s141 = sphi 0, %s141
      %s143 = sphi 0, %s141
      %s144 = sphi 0, %s143
      %s158 = sphi 0, %s144
      %s162 = sphi 0, %s162
      %s164 = sphi 0, %s162
      %s165 = sphi 0, %s164
      %s179 = sphi 0, %s165
      %s183 = sphi 0, %s183
      %s185 = sphi 0, %s183
      %s186 = sphi 0, %s185
      %s200 = sphi 0, %s186
      %s204 = sphi 0, %s204
      %s206 = sphi 0, %s204
      %s207 = sphi 0, %s206
      %s221 = sphi 0, %s207
      %s227 = sphi 0, %s229
      %s230 = sphi 0, %s227
      %s231 = sphi 0, %s230
      %s247 = sphi 0, %s231
    $region4: #{tpu_custom_call.1} parent=1 // loop_header_branch
      %26 = sbr.rel (%p24) target = $region8
    $region5: #{tpu_custom_call.1} parent=1 // loop_body
      %s28 = ssub.s32 %s23, 1
      %s29 = ssub.s32 %s23, 2
      %s30 = sadd.s32 %s23, 1
      %s31 = ssub.s32 %s23, %s30
      %p32 = scmp.eq.s32.totalorder %s31, 0
      %s34 = sadd.s32 %s33, 1
      %s35 = scalar_select %p32, %s33, %s34
      %p38 = pneg %p32
      %p39 = scmp.eq.s32.totalorder %s23, 1
      %p40 = por %p38, %p39
      %p41 = scmp.ne.s32.totalorder %s33, %s36
      %p42 = scmp.eq.s32.totalorder %s23, 0
      %p43 = por %p41, %p42
      %p44 = scmp.ne.s32.totalorder %s33, %s36
      %p45 = scmp.eq.s32.totalorder %s28, 1
      %p46 = por %p44, %p45
      %p47 = scmp.ne.s32.totalorder %s36, %s37
      %p48 = scmp.eq.s32.totalorder %s28, 0
      %p49 = por %p47, %p48
      %p50 = scmp.ne.s32.totalorder %s36, %s37
      %p51 = scmp.eq.s32.totalorder %s29, 1
      %p52 = por %p50, %p51
      %p54 = scmp.ne.s32.totalorder %s37, %s53
      %p55 = scmp.eq.s32.totalorder %s29, 0
      %p56 = por %p54, %p55
      %s58 = sadd.s32 %s57, 1
      %p61 = scmp.eq.s32.totalorder %s23, 1
      %p62 = scmp.ne.s32.totalorder %s57, %s59
      %p63 = scmp.eq.s32.totalorder %s23, 0
      %p64 = por %p62, %p63
      %p65 = scmp.ne.s32.totalorder %s57, %s59
      %p66 = scmp.eq.s32.totalorder %s28, 1
      %p67 = por %p65, %p66
      %p68 = scmp.ne.s32.totalorder %s59, %s60
      %p69 = scmp.eq.s32.totalorder %s28, 0
      %p70 = por %p68, %p69
      %p71 = scmp.ne.s32.totalorder %s59, %s60
      %p72 = scmp.eq.s32.totalorder %s29, 1
      %p73 = por %p71, %p72
      %p75 = scmp.ne.s32.totalorder %s60, %s74
      %p76 = scmp.eq.s32.totalorder %s29, 0
      %p77 = por %p75, %p76
      %s79 = sadd.s32 %s78, 1
      %p82 = scmp.eq.s32.totalorder %s23, 1
      %p83 = scmp.ne.s32.totalorder %s78, %s80
      %p84 = scmp.eq.s32.totalorder %s23, 0
      %p85 = por %p83, %p84
      %p86 = scmp.ne.s32.totalorder %s78, %s80
      %p87 = scmp.eq.s32.totalorder %s28, 1
      %p88 = por %p86, %p87
      %p89 = scmp.ne.s32.totalorder %s80, %s81
      %p90 = scmp.eq.s32.totalorder %s28, 0
      %p91 = por %p89, %p90
      %p92 = scmp.ne.s32.totalorder %s80, %s81
      %p93 = scmp.eq.s32.totalorder %s29, 1
      %p94 = por %p92, %p93
      %p96 = scmp.ne.s32.totalorder %s81, %s95
      %p97 = scmp.eq.s32.totalorder %s29, 0
      %p98 = por %p96, %p97
      %s100 = sadd.s32 %s99, 1
      %p103 = scmp.eq.s32.totalorder %s23, 1
      %p104 = scmp.ne.s32.totalorder %s99, %s101
      %p105 = scmp.eq.s32.totalorder %s23, 0
      %p106 = por %p104, %p105
      %p107 = scmp.ne.s32.totalorder %s99, %s101
      %p108 = scmp.eq.s32.totalorder %s28, 1
      %p109 = por %p107, %p108
      %p110 = scmp.ne.s32.totalorder %s101, %s102
      %p111 = scmp.eq.s32.totalorder %s28, 0
      %p112 = por %p110, %p111
      %p113 = scmp.ne.s32.totalorder %s101, %s102
      %p114 = scmp.eq.s32.totalorder %s29, 1
      %p115 = por %p113, %p114
      %p117 = scmp.ne.s32.totalorder %s102, %s116
      %p118 = scmp.eq.s32.totalorder %s29, 0
      %p119 = por %p117, %p118
      %s121 = sadd.s32 %s120, 1
      %p124 = scmp.eq.s32.totalorder %s23, 1
      %p125 = scmp.ne.s32.totalorder %s120, %s122
      %p126 = scmp.eq.s32.totalorder %s23, 0
      %p127 = por %p125, %p126
      %p128 = scmp.ne.s32.totalorder %s120, %s122
      %p129 = scmp.eq.s32.totalorder %s28, 1
      %p130 = por %p128, %p129
      %p131 = scmp.ne.s32.totalorder %s122, %s123
      %p132 = scmp.eq.s32.totalorder %s28, 0
      %p133 = por %p131, %p132
      %p134 = scmp.ne.s32.totalorder %s122, %s123
      %p135 = scmp.eq.s32.totalorder %s29, 1
      %p136 = por %p134, %p135
      %p138 = scmp.ne.s32.totalorder %s123, %s137
      %p139 = scmp.eq.s32.totalorder %s29, 0
      %p140 = por %p138, %p139
      %s142 = sadd.s32 %s141, 1
      %p145 = scmp.eq.s32.totalorder %s23, 1
      %p146 = scmp.ne.s32.totalorder %s141, %s143
      %p147 = scmp.eq.s32.totalorder %s23, 0
      %p148 = por %p146, %p147
      %p149 = scmp.ne.s32.totalorder %s141, %s143
      %p150 = scmp.eq.s32.totalorder %s28, 1
      %p151 = por %p149, %p150
      %p152 = scmp.ne.s32.totalorder %s143, %s144
      %p153 = scmp.eq.s32.totalorder %s28, 0
      %p154 = por %p152, %p153
      %p155 = scmp.ne.s32.totalorder %s143, %s144
      %p156 = scmp.eq.s32.totalorder %s29, 1
      %p157 = por %p155, %p156
      %p159 = scmp.ne.s32.totalorder %s144, %s158
      %p160 = scmp.eq.s32.totalorder %s29, 0
      %p161 = por %p159, %p160
      %s163 = sadd.s32 %s162, 1
      %p166 = scmp.eq.s32.totalorder %s23, 1
      %p167 = scmp.ne.s32.totalorder %s162, %s164
      %p168 = scmp.eq.s32.totalorder %s23, 0
      %p169 = por %p167, %p168
      %p170 = scmp.ne.s32.totalorder %s162, %s164
      %p171 = scmp.eq.s32.totalorder %s28, 1
      %p172 = por %p170, %p171
      %p173 = scmp.ne.s32.totalorder %s164, %s165
      %p174 = scmp.eq.s32.totalorder %s28, 0
      %p175 = por %p173, %p174
      %p176 = scmp.ne.s32.totalorder %s164, %s165
      %p177 = scmp.eq.s32.totalorder %s29, 1
      %p178 = por %p176, %p177
      %p180 = scmp.ne.s32.totalorder %s165, %s179
      %p181 = scmp.eq.s32.totalorder %s29, 0
      %p182 = por %p180, %p181
      %s184 = sadd.s32 %s183, 1
      %p187 = scmp.eq.s32.totalorder %s23, 1
      %p188 = scmp.ne.s32.totalorder %s183, %s185
      %p189 = scmp.eq.s32.totalorder %s23, 0
      %p190 = por %p188, %p189
      %p191 = scmp.ne.s32.totalorder %s183, %s185
      %p192 = scmp.eq.s32.totalorder %s28, 1
      %p193 = por %p191, %p192
      %p194 = scmp.ne.s32.totalorder %s185, %s186
      %p195 = scmp.eq.s32.totalorder %s28, 0
      %p196 = por %p194, %p195
      %p197 = scmp.ne.s32.totalorder %s185, %s186
      %p198 = scmp.eq.s32.totalorder %s29, 1
      %p199 = por %p197, %p198
      %p201 = scmp.ne.s32.totalorder %s186, %s200
      %p202 = scmp.eq.s32.totalorder %s29, 0
      %p203 = por %p201, %p202
      %s205 = sadd.s32 %s204, 1
      %p208 = scmp.eq.s32.totalorder %s23, 1
      %p209 = scmp.ne.s32.totalorder %s204, %s206
      %p210 = scmp.eq.s32.totalorder %s23, 0
      %p211 = por %p209, %p210
      %p212 = scmp.ne.s32.totalorder %s204, %s206
      %p213 = scmp.eq.s32.totalorder %s28, 1
      %p214 = por %p212, %p213
      %p215 = scmp.ne.s32.totalorder %s206, %s207
      %p216 = scmp.eq.s32.totalorder %s28, 0
      %p217 = por %p215, %p216
      %p218 = scmp.ne.s32.totalorder %s206, %s207
      %p219 = scmp.eq.s32.totalorder %s29, 1
      %p220 = por %p218, %p219
      %p222 = scmp.ne.s32.totalorder %s207, %s221
      %p223 = scmp.eq.s32.totalorder %s29, 0
      %p224 = por %p222, %p223
      %s225 = ssub.s32 %s23, %s30
      %p226 = scmp.eq.s32.totalorder %s225, 0
      %s228 = sadd.s32 %s227, 1
      %s229 = scalar_select %p226, %s227, %s228
      %p232 = pneg %p226
      %p233 = scmp.eq.s32.totalorder %s23, 1
      %p234 = por %p232, %p233
      %p235 = scmp.ne.s32.totalorder %s227, %s230
      %p236 = scmp.eq.s32.totalorder %s23, 0
      %p237 = por %p235, %p236
      %p238 = scmp.ne.s32.totalorder %s227, %s230
      %p239 = scmp.eq.s32.totalorder %s28, 1
      %p240 = por %p238, %p239
      %p241 = scmp.ne.s32.totalorder %s230, %s231
      %p242 = scmp.eq.s32.totalorder %s28, 0
      %p243 = por %p241, %p242
      %p244 = scmp.ne.s32.totalorder %s230, %s231
      %p245 = scmp.eq.s32.totalorder %s29, 1
      %p246 = por %p244, %p245
      %p248 = scmp.ne.s32.totalorder %s231, %s247
      %p249 = scmp.eq.s32.totalorder %s29, 0
      %p250 = por %p248, %p249
      %p251 = scmp.le.s32.totalorder 1, %s23
      %p252 = scmp.lt.s32.totalorder %s23, 3
      %p253 = pnand %p251, %p252
      %p254 = pneg %p253
      // Predicated region
      $region9: #{tpu_custom_call.1} parent=5 // pred_check
        _
      $region10: #{tpu_custom_call.1} parent=5 // pred_check_branch
        %256 = sbr.rel (%p253) target = $region12
      $region11: #{tpu_custom_call.1} parent=5 // pred_region
        %s257 = ssub.s32 %s23, 1
        // Predicated region
        $region13: #{tpu_custom_call.1} parent=11 // pred_check
          %p258 = pneg %p70
        $region14: #{tpu_custom_call.1} parent=11 // pred_check_branch
          %260 = sbr.rel (%p258) target = $region16
        $region15: #{tpu_custom_call.1} parent=11 // pred_region
          %s262 = ssub.s32 512, 512
          %263 = vsyncadd [#allocation7], %s262
          %s264 = sshll.u32 [#allocation6], 4
          %s265 = int_to_ptr.vmem [resolvable:$true] %s264
          %270 = dma.hbm_to_vmem [thread:$0]  %s1, 512, %s265, [#allocation7], 64, 64, 4
        $region16: #{tpu_custom_call.1} parent=11 // pred_fallthru
          _
        // Predicated region
        $region17: #{tpu_custom_call.1} parent=11 // pred_check
          %p271 = pneg %p91
        $region18: #{tpu_custom_call.1} parent=11 // pred_check_branch
          %273 = sbr.rel (%p271) target = $region20
        $region19: #{tpu_custom_call.1} parent=11 // pred_region
          _
        $region20: #{tpu_custom_call.1} parent=11 // pred_fallthru
          _
        // Predicated region
        $region21: #{tpu_custom_call.1} parent=11 // pred_check
          %p274 = pneg %p112
        $region22: #{tpu_custom_call.1} parent=11 // pred_check_branch
          %276 = sbr.rel (%p274) target = $region24
        $region23: #{tpu_custom_call.1} parent=11 // pred_region
          %s278 = ssub.s32 3072, 3072
          %279 = vsyncadd [#allocation7], %s278
          %s280 = sshll.u32 [#allocation8], 4
          %s281 = int_to_ptr.vmem [resolvable:$true] %s280
          %286 = dma.hbm_to_vmem [thread:$0]  %s3, 3072, %s281, [#allocation7], 64, 64, 4
        $region24: #{tpu_custom_call.1} parent=11 // pred_fallthru
          _
        // Predicated region
        $region25: #{tpu_custom_call.1} parent=11 // pred_check
          %p287 = pneg %p133
        $region26: #{tpu_custom_call.1} parent=11 // pred_check_branch
          %289 = sbr.rel (%p287) target = $region28
        $region27: #{tpu_custom_call.1} parent=11 // pred_region
          _
        $region28: #{tpu_custom_call.1} parent=11 // pred_fallthru
          _
        // Predicated region
        $region29: #{tpu_custom_call.1} parent=11 // pred_check
          %p290 = pneg %p154
        $region30: #{tpu_custom_call.1} parent=11 // pred_check_branch
          %292 = sbr.rel (%p290) target = $region32
        $region31: #{tpu_custom_call.1} parent=11 // pred_region
          %s294 = ssub.s32 1024, 1024
          %295 = vsyncadd [#allocation10], %s294
          %s296 = sshll.u32 [#allocation9], 4
          %s297 = int_to_ptr.vmem [resolvable:$true] %s296
          %302 = dma.hbm_to_vmem [thread:$0]  %s5, 1024, %s297, [#allocation10], 64, 64, 4
        $region32: #{tpu_custom_call.1} parent=11 // pred_fallthru
          _
        // Predicated region
        $region33: #{tpu_custom_call.1} parent=11 // pred_check
          %p303 = pneg %p175
        $region34: #{tpu_custom_call.1} parent=11 // pred_check_branch
          %305 = sbr.rel (%p303) target = $region36
        $region35: #{tpu_custom_call.1} parent=11 // pred_region
          _
        $region36: #{tpu_custom_call.1} parent=11 // pred_fallthru
          _
        // Predicated region
        $region37: #{tpu_custom_call.1} parent=11 // pred_check
          %p306 = pneg %p196
        $region38: #{tpu_custom_call.1} parent=11 // pred_check_branch
          %308 = sbr.rel (%p306) target = $region40
        $region39: #{tpu_custom_call.1} parent=11 // pred_region
          %s310 = ssub.s32 512, 512
          %311 = vsyncadd [#allocation10], %s310
          %s312 = sshll.u32 [#allocation11], 4
          %s313 = int_to_ptr.vmem [resolvable:$true] %s312
          %318 = dma.hbm_to_vmem [thread:$0]  %s7, 512, %s313, [#allocation10], 64, 64, 4
        $region40: #{tpu_custom_call.1} parent=11 // pred_fallthru
          _
        // Predicated region
        $region41: #{tpu_custom_call.1} parent=11 // pred_check
          %p319 = pneg %p217
        $region42: #{tpu_custom_call.1} parent=11 // pred_check_branch
          %321 = sbr.rel (%p319) target = $region44
        $region43: #{tpu_custom_call.1} parent=11 // pred_region
          _
        $region44: #{tpu_custom_call.1} parent=11 // pred_fallthru
          _
      $region12: #{tpu_custom_call.1} parent=5 // pred_fallthru
        _
      %p322 = scmp.lt.s32.totalorder %s23, 2
      // Predicated region
      $region45: #{tpu_custom_call.1} parent=5 // pred_check
        %p323 = pneg %p322
      $region46: #{tpu_custom_call.1} parent=5 // pred_check_branch
        %325 = sbr.rel (%p323) target = $region48
      $region47: #{tpu_custom_call.1} parent=5 // pred_region
        // Predicated region
        $region49: #{tpu_custom_call.1} parent=47 // pred_check
          %p326 = pneg %p43
        $region50: #{tpu_custom_call.1} parent=47 // pred_check_branch
          %328 = sbr.rel (%p326) target = $region52
        $region51: #{tpu_custom_call.1} parent=47 // pred_region
          %s329 = sand.u32 %s33, 1
          %s330 = scalar_lea.sflag [#allocation4], %s329
          %s331 = sand.u32 %s33, 1
          %s332 = smul.addr %s331, 8
          %s333 = scalar_lea.vmem [#allocation3], %s332
          %s335 = ssub.s32 128, 128
          %336 = vsyncadd %s330, %s335
          %s337 = smul.addr %s23, 2
          %s338 = smul.addr %s337, 64
          %s339 = scalar_lea.hbm %s0, %s338
          %s340 = sshll.u32 %s333, 4
          %s341 = int_to_ptr.vmem [resolvable:$true] %s340
          %346 = dma.hbm_to_vmem [thread:$0]  %s339, 128, %s341, %s330, 64, 64, 4
        $region52: #{tpu_custom_call.1} parent=47 // pred_fallthru
          _
      $region48: #{tpu_custom_call.1} parent=5 // pred_fallthru
        _
      %p347 = scmp.le.s32.totalorder 1, %s23
      %p348 = scmp.lt.s32.totalorder %s23, 3
      %p349 = pnand %p347, %p348
      %p350 = pneg %p349
      // Predicated region
      $region53: #{tpu_custom_call.1} parent=5 // pred_check
        _
      $region54: #{tpu_custom_call.1} parent=5 // pred_check_branch
        %352 = sbr.rel (%p349) target = $region56
      $region55: #{tpu_custom_call.1} parent=5 // pred_region
        %s353 = ssub.s32 %s23, 1
        %s354 = sand.u32 %s36, 1
        %s355 = scalar_lea.sflag [#allocation4], %s354
        %s356 = sand.u32 %s36, 1
        %s357 = smul.addr %s356, 8
        %s358 = scalar_lea.vmem [#allocation3], %s357
        // Predicated region
        $region57: #{tpu_custom_call.1} parent=55 // pred_check
          %p359 = pneg %p49
        $region58: #{tpu_custom_call.1} parent=55 // pred_check_branch
          %361 = sbr.rel (%p359) target = $region60
        $region59: #{tpu_custom_call.1} parent=55 // pred_region
          %362 = dma.done %s355, 128
        $region60: #{tpu_custom_call.1} parent=55 // pred_fallthru
          _
        // Predicated region
        $region61: #{tpu_custom_call.1} parent=55 // pred_check
          %p363 = pneg %p70
        $region62: #{tpu_custom_call.1} parent=55 // pred_check_branch
          %365 = sbr.rel (%p363) target = $region64
        $region63: #{tpu_custom_call.1} parent=55 // pred_region
          %366 = dma.done [#allocation7], 512
        $region64: #{tpu_custom_call.1} parent=55 // pred_fallthru
          _
        // Predicated region
        $region65: #{tpu_custom_call.1} parent=55 // pred_check
          %p367 = pneg %p112
        $region66: #{tpu_custom_call.1} parent=55 // pred_check_branch
          %369 = sbr.rel (%p367) target = $region68
        $region67: #{tpu_custom_call.1} parent=55 // pred_region
          %370 = dma.done [#allocation7], 3072
        $region68: #{tpu_custom_call.1} parent=55 // pred_fallthru
          _
        // Predicated region
        $region69: #{tpu_custom_call.1} parent=55 // pred_check
          %p371 = pneg %p154
        $region70: #{tpu_custom_call.1} parent=55 // pred_check_branch
          %373 = sbr.rel (%p371) target = $region72
        $region71: #{tpu_custom_call.1} parent=55 // pred_region
          %374 = dma.done [#allocation10], 1024
        $region72: #{tpu_custom_call.1} parent=55 // pred_fallthru
          _
        // Predicated region
        $region73: #{tpu_custom_call.1} parent=55 // pred_check
          %p375 = pneg %p196
        $region74: #{tpu_custom_call.1} parent=55 // pred_check_branch
          %377 = sbr.rel (%p375) target = $region76
        $region75: #{tpu_custom_call.1} parent=55 // pred_region
          %378 = dma.done [#allocation10], 512
        $region76: #{tpu_custom_call.1} parent=55 // pred_fallthru
          _
        %s379 = sand.u32 %s36, 1
        %s380 = scalar_lea.sflag [#allocation4], %s379
        %s381 = sand.u32 %s36, 1
        %s382 = smul.addr %s381, 8
        %s383 = scalar_lea.vmem [#allocation3], %s382
        %p384 = pneg %p49
        %p385 = pneg %p46
        %p386 = pneg %p70
        %p387 = pneg %p67
        %p388 = pneg %p91
        %p389 = pneg %p88
        %p390 = pneg %p112
        %p391 = pneg %p109
        %p392 = pneg %p133
        %p393 = pneg %p130
        %p394 = pneg %p154
        %p395 = pneg %p151
        %p396 = pneg %p175
        %p397 = pneg %p172
        %p398 = pneg %p196
        %p399 = pneg %p193
        %p400 = pneg %p217
        %p401 = pneg %p214
        %p402 = pneg %p243
        %p403 = pneg %p240
        %s404 = sand.u32 %s230, 1
        %s405 = scalar_lea.sflag [#allocation5], %s404
        %s406 = sand.u32 %s230, 1
        %s407 = smul.addr %s406, 16
        %s408 = scalar_lea.vmem [#allocation12], %s407
        %v410 = vld [vmem:[%s358] sm:$0xf]
        %v411 = vld [vmem:[%s358 + $0x4] sm:$0xf]
        %v412 = vld [vmem:[#allocation6] sm:$0xf]
        %v413 = vld [vmem:[#allocation6 + $0x4] sm:$0xf]
        %v414 = vld [vmem:[#allocation6 + $0x8] sm:$0xf]
        %v415 = vld [vmem:[#allocation6 + $0xc] sm:$0xf]
        %v416 = vld [vmem:[#allocation6 + $0x10] sm:$0xf]
        %v417 = vld [vmem:[#allocation6 + $0x14] sm:$0xf]
        %v418 = vld [vmem:[#allocation6 + $0x18] sm:$0xf]
        %v419 = vld [vmem:[#allocation6 + $0x1c] sm:$0xf]
        %v420 = vld [vmem:[%s2] sm:$0x1]
        %v422 = vlaneseq
        %v423 = vshrl.u32 %v422, 7
        %v424 = vsub.s32 0, %v423
        %v425 = vrot.slane %v420, %v424
        %v429 = vunpack.c.l.b16 %v410
        %v430 = vunpack.c.l.b16 %v411
        %v431 = vpack.c.b16 %v430, %v429
        %v440 = vunpack.c.l.b16 %v412
        %v441 = vunpack.c.l.b16 %v413
        %v442 = vunpack.c.l.b16 %v414
        %v443 = vunpack.c.l.b16 %v415
        %v444 = vunpack.c.l.b16 %v416
        %v445 = vunpack.c.l.b16 %v417
        %v446 = vunpack.c.l.b16 %v418
        %v447 = vunpack.c.l.b16 %v419
        %v448 = vpack.c.b16 %v441, %v440
        %v449 = vpack.c.b16 %v443, %v442
        %v450 = vpack.c.b16 %v445, %v444
        %v451 = vpack.c.b16 %v447, %v446
        %vm456 = vcmask 523264
        %v458 = vsel %vm456, %v431, 0
        %460 = vmatprep.subr.bf16.mxu0 0
        %461 = vmatpush1.bf16.msra.mxu0 0
        %462 = vmatprep.subr.bf16.mxu0 0
        %463 = vmatpush1.bf16.msra.mxu0 0
        %464 = vmatprep.subr.bf16.mxu0 0
        %465 = vmatpush1.bf16.msra.mxu0 0
        %466 = vmatprep.subr.bf16.mxu0 0
        %467 = vmatpush1.bf16.msra.mxu0 0
        %468 = vmatprep.subr.bf16.mxu0 0
        %469 = vmatpush1.bf16.msra.mxu0 %v451
        %470 = vmatprep.subr.bf16.mxu0 0
        %471 = vmatpush1.bf16.msra.mxu0 %v450
        %472 = vmatprep.subr.bf16.mxu0 0
        %473 = vmatpush1.bf16.msra.mxu0 %v449
        %474 = vmatprep.subr.bf16.mxu0 0
        %475 = vmatpush1.bf16.msra.mxu0 %v448
        %476 = vmatprep.subr.bf16.mxu0 0
        %477 = vmatpush2.bf16.msra.mxu0 0
        %478 = vmatprep.subr.bf16.mxu0 0
        %479 = vmatpush2.bf16.msra.mxu0 0
        %480 = vmatprep.subr.bf16.mxu0 0
        %481 = vmatpush2.bf16.msra.mxu0 0
        %482 = vmatprep.subr.bf16.mxu0 0
        %483 = vmatpush2.bf16.msra.mxu0 0
        %484 = vmatprep.subr.bf16.mxu0 0
        %485 = vmatpush2.bf16.msra.mxu0 0
        %486 = vmatprep.subr.bf16.mxu0 0
        %487 = vmatpush2.bf16.msra.mxu0 0
        %488 = vmatprep.subr.bf16.mxu0 0
        %489 = vmatpush2.bf16.msra.mxu0 0
        %490 = vmatprep.subr.bf16.mxu0 0
        %491 = vmatpush2.bf16.msra.mxu0 0
        %492 = vmatprep.mubr.bf16.mxu0 0
        %493 = vmatmul.mubr.bf16.gmra.mxu0 %v458
        %v494 = vpop.f32.mrf.mxu0
        %v495 = vadd.f32 %v425, %v494
        %v496 = vpop.f32.mrf.mxu0
        %v497 = vpop.f32.mrf.mxu0
        %v498 = vadd.f32 %v425, %v497
        %v499 = vpop.f32.mrf.mxu0
        %500 = vdwg.mxu0
        %v501 = vmax.f32 %v495, 0.0
        %v502 = vmax.f32 %v498, 0.0
        %503 = vst [vmem:[#allocation2] sm:$0x1] 0.0
        %504 = vst [vmem:[#allocation2 + $0x11] sm:$0x1] 0.0
        %505 = vst [vmem:[#allocation2 + $0x1] sm:$0xff] %v501
        %506 = vst [vmem:[#allocation2 + $0x9] sm:$0xff] %v502
        %v507 = vld [vmem:[#allocation2] sm:$0xff]
        %v508 = vld [vmem:[#allocation2 + $0x8] sm:$0xff]
        %v509 = vpack.c.bf16 %v508, %v507
        %v510 = vld [vmem:[#allocation8] sm:$0xf]
        %v511 = vld [vmem:[#allocation8 + $0x4] sm:$0xf]
        %v512 = vld [vmem:[#allocation8 + $0x8] sm:$0xf]
        %v513 = vld [vmem:[#allocation8 + $0xc] sm:$0xf]
        %v514 = vld [vmem:[#allocation8 + $0x10] sm:$0xf]
        %v515 = vld [vmem:[#allocation8 + $0x14] sm:$0xf]
        %v516 = vld [vmem:[#allocation8 + $0x18] sm:$0xf]
        %v517 = vld [vmem:[#allocation8 + $0x1c] sm:$0xf]
        %v518 = vld [vmem:[#allocation8 + $0x20] sm:$0xf]
        %v519 = vld [vmem:[#allocation8 + $0x24] sm:$0xf]
        %v520 = vld [vmem:[#allocation8 + $0x28] sm:$0xf]
        %v521 = vld [vmem:[#allocation8 + $0x2c] sm:$0xf]
        %v522 = vld [vmem:[#allocation8 + $0x30] sm:$0xf]
        %v523 = vld [vmem:[#allocation8 + $0x34] sm:$0xf]
        %v524 = vld [vmem:[#allocation8 + $0x38] sm:$0xf]
        %v525 = vld [vmem:[#allocation8 + $0x3c] sm:$0xf]
        %v526 = vld [vmem:[#allocation2 + $0x1] sm:$0xff]
        %v527 = vld [vmem:[#allocation2 + $0x9] sm:$0xff]
        %v528 = vpack.c.bf16 %v527, %v526
        %s529 = scalar_lea.vmem [#allocation8], 64
        %v530 = vld [vmem:[%s529] sm:$0xf]
        %v531 = vld [vmem:[%s529 + $0x4] sm:$0xf]
        %v532 = vld [vmem:[%s529 + $0x8] sm:$0xf]
        %v533 = vld [vmem:[%s529 + $0xc] sm:$0xf]
        %v534 = vld [vmem:[%s529 + $0x10] sm:$0xf]
        %v535 = vld [vmem:[%s529 + $0x14] sm:$0xf]
        %v536 = vld [vmem:[%s529 + $0x18] sm:$0xf]
        %v537 = vld [vmem:[%s529 + $0x1c] sm:$0xf]
        %v538 = vld [vmem:[%s529 + $0x20] sm:$0xf]
        %v539 = vld [vmem:[%s529 + $0x24] sm:$0xf]
        %v540 = vld [vmem:[%s529 + $0x28] sm:$0xf]
        %v541 = vld [vmem:[%s529 + $0x2c] sm:$0xf]
        %v542 = vld [vmem:[%s529 + $0x30] sm:$0xf]
        %v543 = vld [vmem:[%s529 + $0x34] sm:$0xf]
        %v544 = vld [vmem:[%s529 + $0x38] sm:$0xf]
        %v545 = vld [vmem:[%s529 + $0x3c] sm:$0xf]
        %v562 = vunpack.c.l.b16 %v530
        %v563 = vunpack.c.l.b16 %v531
        %v564 = vunpack.c.l.b16 %v532
        %v565 = vunpack.c.l.b16 %v533
        %v566 = vunpack.c.l.b16 %v534
        %v567 = vunpack.c.l.b16 %v535
        %v568 = vunpack.c.l.b16 %v536
        %v569 = vunpack.c.l.b16 %v537
        %v570 = vunpack.c.l.b16 %v538
        %v571 = vunpack.c.l.b16 %v539
        %v572 = vunpack.c.l.b16 %v540
        %v573 = vunpack.c.l.b16 %v541
        %v574 = vunpack.c.l.b16 %v542
        %v575 = vunpack.c.l.b16 %v543
        %v576 = vunpack.c.l.b16 %v544
        %v577 = vunpack.c.l.b16 %v545
        %v578 = vpack.c.b16 %v563, %v562
        %v579 = vpack.c.b16 %v565, %v564
        %v580 = vpack.c.b16 %v567, %v566
        %v581 = vpack.c.b16 %v569, %v568
        %v582 = vpack.c.b16 %v571, %v570
        %v583 = vpack.c.b16 %v573, %v572
        %v584 = vpack.c.b16 %v575, %v574
        %v585 = vpack.c.b16 %v577, %v576
        %594 = vmatprep.subr.bf16.mxu0 0
        %595 = vmatpush1.bf16.msra.mxu0 %v585
        %596 = vmatprep.subr.bf16.mxu0 0
        %597 = vmatpush1.bf16.msra.mxu0 %v584
        %598 = vmatprep.subr.bf16.mxu0 0
        %599 = vmatpush1.bf16.msra.mxu0 %v583
        %600 = vmatprep.subr.bf16.mxu0 0
        %601 = vmatpush1.bf16.msra.mxu0 %v582
        %602 = vmatprep.subr.bf16.mxu0 0
        %603 = vmatpush1.bf16.msra.mxu0 %v581
        %604 = vmatprep.subr.bf16.mxu0 0
        %605 = vmatpush1.bf16.msra.mxu0 %v580
        %606 = vmatprep.subr.bf16.mxu0 0
        %607 = vmatpush1.bf16.msra.mxu0 %v579
        %608 = vmatprep.subr.bf16.mxu0 0
        %609 = vmatpush1.bf16.msra.mxu0 %v578
        %610 = vmatprep.subr.bf16.mxu0 0
        %611 = vmatpush2.bf16.msra.mxu0 0
        %612 = vmatprep.subr.bf16.mxu0 0
        %613 = vmatpush2.bf16.msra.mxu0 0
        %614 = vmatprep.subr.bf16.mxu0 0
        %615 = vmatpush2.bf16.msra.mxu0 0
        %616 = vmatprep.subr.bf16.mxu0 0
        %617 = vmatpush2.bf16.msra.mxu0 0
        %618 = vmatprep.subr.bf16.mxu0 0
        %619 = vmatpush2.bf16.msra.mxu0 0
        %620 = vmatprep.subr.bf16.mxu0 0
        %621 = vmatpush2.bf16.msra.mxu0 0
        %622 = vmatprep.subr.bf16.mxu0 0
        %623 = vmatpush2.bf16.msra.mxu0 0
        %624 = vmatprep.subr.bf16.mxu0 0
        %625 = vmatpush2.bf16.msra.mxu0 0
        %626 = vmatprep.mubr.bf16.mxu0 0
        %627 = vmatmul.mubr.bf16.gmra.mxu0 %v528
        %v628 = vpop.f32.mrf.mxu0
        %v629 = vadd.f32 0.0, %v628
        %v630 = vpop.f32.mrf.mxu0
        %v631 = vpop.f32.mrf.mxu0
        %v632 = vadd.f32 0.0, %v631
        %v633 = vpop.f32.mrf.mxu0
        %634 = vdwg.mxu0
        %v651 = vunpack.c.l.b16 %v510
        %v652 = vunpack.c.l.b16 %v511
        %v653 = vunpack.c.l.b16 %v512
        %v654 = vunpack.c.l.b16 %v513
        %v655 = vunpack.c.l.b16 %v514
        %v656 = vunpack.c.l.b16 %v515
        %v657 = vunpack.c.l.b16 %v516
        %v658 = vunpack.c.l.b16 %v517
        %v659 = vunpack.c.l.b16 %v518
        %v660 = vunpack.c.l.b16 %v519
        %v661 = vunpack.c.l.b16 %v520
        %v662 = vunpack.c.l.b16 %v521
        %v663 = vunpack.c.l.b16 %v522
        %v664 = vunpack.c.l.b16 %v523
        %v665 = vunpack.c.l.b16 %v524
        %v666 = vunpack.c.l.b16 %v525
        %v667 = vpack.c.b16 %v652, %v651
        %v668 = vpack.c.b16 %v654, %v653
        %v669 = vpack.c.b16 %v656, %v655
        %v670 = vpack.c.b16 %v658, %v657
        %v671 = vpack.c.b16 %v660, %v659
        %v672 = vpack.c.b16 %v662, %v661
        %v673 = vpack.c.b16 %v664, %v663
        %v674 = vpack.c.b16 %v666, %v665
        %683 = vmatprep.subr.bf16.mxu0 0
        %684 = vmatpush1.bf16.msra.mxu0 %v674
        %685 = vmatprep.subr.bf16.mxu0 0
        %686 = vmatpush1.bf16.msra.mxu0 %v673
        %687 = vmatprep.subr.bf16.mxu0 0
        %688 = vmatpush1.bf16.msra.mxu0 %v672
        %689 = vmatprep.subr.bf16.mxu0 0
        %690 = vmatpush1.bf16.msra.mxu0 %v671
        %691 = vmatprep.subr.bf16.mxu0 0
        %692 = vmatpush1.bf16.msra.mxu0 %v670
        %693 = vmatprep.subr.bf16.mxu0 0
        %694 = vmatpush1.bf16.msra.mxu0 %v669
        %695 = vmatprep.subr.bf16.mxu0 0
        %696 = vmatpush1.bf16.msra.mxu0 %v668
        %697 = vmatprep.subr.bf16.mxu0 0
        %698 = vmatpush1.bf16.msra.mxu0 %v667
        %699 = vmatprep.subr.bf16.mxu0 0
        %700 = vmatpush2.bf16.msra.mxu0 0
        %701 = vmatprep.subr.bf16.mxu0 0
        %702 = vmatpush2.bf16.msra.mxu0 0
        %703 = vmatprep.subr.bf16.mxu0 0
        %704 = vmatpush2.bf16.msra.mxu0 0
        %705 = vmatprep.subr.bf16.mxu0 0
        %706 = vmatpush2.bf16.msra.mxu0 0
        %707 = vmatprep.subr.bf16.mxu0 0
        %708 = vmatpush2.bf16.msra.mxu0 0
        %709 = vmatprep.subr.bf16.mxu0 0
        %710 = vmatpush2.bf16.msra.mxu0 0
        %711 = vmatprep.subr.bf16.mxu0 0
        %712 = vmatpush2.bf16.msra.mxu0 0
        %713 = vmatprep.subr.bf16.mxu0 0
        %714 = vmatpush2.bf16.msra.mxu0 0
        %715 = vmatprep.mubr.bf16.mxu0 0
        %716 = vmatmul.mubr.bf16.gmra.mxu0 %v509
        %v717 = vpop.f32.mrf.mxu0
        %v718 = vadd.f32 %v629, %v717
        %v719 = vpop.f32.mrf.mxu0
        %v720 = vpop.f32.mrf.mxu0
        %v721 = vadd.f32 %v632, %v720
        %v722 = vpop.f32.mrf.mxu0
        %723 = vdwg.mxu0
        %v724 = vld [vmem:[#allocation2 + $0x2] sm:$0xff]
        %v725 = vld [vmem:[#allocation2 + $0xa] sm:$0xff]
        %v726 = vpack.c.bf16 %v725, %v724
        %s727 = scalar_lea.vmem [#allocation8], 128
        %v728 = vld [vmem:[%s727] sm:$0xf]
        %v729 = vld [vmem:[%s727 + $0x4] sm:$0xf]
        %v730 = vld [vmem:[%s727 + $0x8] sm:$0xf]
        %v731 = vld [vmem:[%s727 + $0xc] sm:$0xf]
        %v732 = vld [vmem:[%s727 + $0x10] sm:$0xf]
        %v733 = vld [vmem:[%s727 + $0x14] sm:$0xf]
        %v734 = vld [vmem:[%s727 + $0x18] sm:$0xf]
        %v735 = vld [vmem:[%s727 + $0x1c] sm:$0xf]
        %v736 = vld [vmem:[%s727 + $0x20] sm:$0xf]
        %v737 = vld [vmem:[%s727 + $0x24] sm:$0xf]
        %v738 = vld [vmem:[%s727 + $0x28] sm:$0xf]
        %v739 = vld [vmem:[%s727 + $0x2c] sm:$0xf]
        %v740 = vld [vmem:[%s727 + $0x30] sm:$0xf]
        %v741 = vld [vmem:[%s727 + $0x34] sm:$0xf]
        %v742 = vld [vmem:[%s727 + $0x38] sm:$0xf]
        %v743 = vld [vmem:[%s727 + $0x3c] sm:$0xf]
        %v760 = vunpack.c.l.b16 %v728
        %v761 = vunpack.c.l.b16 %v729
        %v762 = vunpack.c.l.b16 %v730
        %v763 = vunpack.c.l.b16 %v731
        %v764 = vunpack.c.l.b16 %v732
        %v765 = vunpack.c.l.b16 %v733
        %v766 = vunpack.c.l.b16 %v734
        %v767 = vunpack.c.l.b16 %v735
        %v768 = vunpack.c.l.b16 %v736
        %v769 = vunpack.c.l.b16 %v737
        %v770 = vunpack.c.l.b16 %v738
        %v771 = vunpack.c.l.b16 %v739
        %v772 = vunpack.c.l.b16 %v740
        %v773 = vunpack.c.l.b16 %v741
        %v774 = vunpack.c.l.b16 %v742
        %v775 = vunpack.c.l.b16 %v743
        %v776 = vpack.c.b16 %v761, %v760
        %v777 = vpack.c.b16 %v763, %v762
        %v778 = vpack.c.b16 %v765, %v764
        %v779 = vpack.c.b16 %v767, %v766
        %v780 = vpack.c.b16 %v769, %v768
        %v781 = vpack.c.b16 %v771, %v770
        %v782 = vpack.c.b16 %v773, %v772
        %v783 = vpack.c.b16 %v775, %v774
        %792 = vmatprep.subr.bf16.mxu0 0
        %793 = vmatpush1.bf16.msra.mxu0 %v783
        %794 = vmatprep.subr.bf16.mxu0 0
        %795 = vmatpush1.bf16.msra.mxu0 %v782
        %796 = vmatprep.subr.bf16.mxu0 0
        %797 = vmatpush1.bf16.msra.mxu0 %v781
        %798 = vmatprep.subr.bf16.mxu0 0
        %799 = vmatpush1.bf16.msra.mxu0 %v780
        %800 = vmatprep.subr.bf16.mxu0 0
        %801 = vmatpush1.bf16.msra.mxu0 %v779
        %802 = vmatprep.subr.bf16.mxu0 0
        %803 = vmatpush1.bf16.msra.mxu0 %v778
        %804 = vmatprep.subr.bf16.mxu0 0
        %805 = vmatpush1.bf16.msra.mxu0 %v777
        %806 = vmatprep.subr.bf16.mxu0 0
        %807 = vmatpush1.bf16.msra.mxu0 %v776
        %808 = vmatprep.subr.bf16.mxu0 0
        %809 = vmatpush2.bf16.msra.mxu0 0
        %810 = vmatprep.subr.bf16.mxu0 0
        %811 = vmatpush2.bf16.msra.mxu0 0
        %812 = vmatprep.subr.bf16.mxu0 0
        %813 = vmatpush2.bf16.msra.mxu0 0
        %814 = vmatprep.subr.bf16.mxu0 0
        %815 = vmatpush2.bf16.msra.mxu0 0
        %816 = vmatprep.subr.bf16.mxu0 0
        %817 = vmatpush2.bf16.msra.mxu0 0
        %818 = vmatprep.subr.bf16.mxu0 0
        %819 = vmatpush2.bf16.msra.mxu0 0
        %820 = vmatprep.subr.bf16.mxu0 0
        %821 = vmatpush2.bf16.msra.mxu0 0
        %822 = vmatprep.subr.bf16.mxu0 0
        %823 = vmatpush2.bf16.msra.mxu0 0
        %824 = vmatprep.mubr.bf16.mxu0 0
        %825 = vmatmul.mubr.bf16.gmra.mxu0 %v726
        %v826 = vpop.f32.mrf.mxu0
        %v827 = vadd.f32 0.0, %v826
        %v828 = vpop.f32.mrf.mxu0
        %v829 = vpop.f32.mrf.mxu0
        %v830 = vadd.f32 0.0, %v829
        %v831 = vpop.f32.mrf.mxu0
        %832 = vdwg.mxu0
        %v833 = vadd.f32 %v718, %v827
        %v834 = vadd.f32 %v721, %v830
        %v835 = vld [vmem:[%s4] sm:$0x1]
        %v837 = vlaneseq
        %v838 = vshrl.u32 %v837, 7
        %v839 = vsub.s32 0, %v838
        %v840 = vrot.slane %v835, %v839
        %v842 = vadd.f32 %v833, %v840
        %v843 = vadd.f32 %v834, %v840
        %v844 = vmax.f32 %v842, 0.0
        %v845 = vmax.f32 %v843, 0.0
        %v846 = vpack.c.bf16 %v845, %v844
        %v847 = vld [vmem:[#allocation9] sm:$0xf]
        %v848 = vld [vmem:[#allocation9 + $0x4] sm:$0xf]
        %v849 = vld [vmem:[#allocation9 + $0x8] sm:$0xf]
        %v850 = vld [vmem:[#allocation9 + $0xc] sm:$0xf]
        %v851 = vld [vmem:[#allocation9 + $0x10] sm:$0xf]
        %v852 = vld [vmem:[#allocation9 + $0x14] sm:$0xf]
        %v853 = vld [vmem:[#allocation9 + $0x18] sm:$0xf]
        %v854 = vld [vmem:[#allocation9 + $0x1c] sm:$0xf]
        %v855 = vld [vmem:[#allocation9 + $0x20] sm:$0xf]
        %v856 = vld [vmem:[#allocation9 + $0x24] sm:$0xf]
        %v857 = vld [vmem:[#allocation9 + $0x28] sm:$0xf]
        %v858 = vld [vmem:[#allocation9 + $0x2c] sm:$0xf]
        %v859 = vld [vmem:[#allocation9 + $0x30] sm:$0xf]
        %v860 = vld [vmem:[#allocation9 + $0x34] sm:$0xf]
        %v861 = vld [vmem:[#allocation9 + $0x38] sm:$0xf]
        %v862 = vld [vmem:[#allocation9 + $0x3c] sm:$0xf]
        %v863 = vld [vmem:[%s6] sm:$0x1]
        %v865 = vlaneseq
        %v866 = vshrl.u32 %v865, 7
        %v867 = vsub.s32 0, %v866
        %v868 = vrot.slane %v863, %v867
        %v886 = vunpack.c.l.b16 %v847
        %v887 = vunpack.c.l.b16 %v848
        %v888 = vunpack.c.l.b16 %v849
        %v889 = vunpack.c.l.b16 %v850
        %v890 = vunpack.c.l.b16 %v851
        %v891 = vunpack.c.l.b16 %v852
        %v892 = vunpack.c.l.b16 %v853
        %v893 = vunpack.c.l.b16 %v854
        %v894 = vunpack.c.l.b16 %v855
        %v895 = vunpack.c.l.b16 %v856
        %v896 = vunpack.c.l.b16 %v857
        %v897 = vunpack.c.l.b16 %v858
        %v898 = vunpack.c.l.b16 %v859
        %v899 = vunpack.c.l.b16 %v860
        %v900 = vunpack.c.l.b16 %v861
        %v901 = vunpack.c.l.b16 %v862
        %v902 = vpack.c.b16 %v887, %v886
        %v903 = vpack.c.b16 %v889, %v888
        %v904 = vpack.c.b16 %v891, %v890
        %v905 = vpack.c.b16 %v893, %v892
        %v906 = vpack.c.b16 %v895, %v894
        %v907 = vpack.c.b16 %v897, %v896
        %v908 = vpack.c.b16 %v899, %v898
        %v909 = vpack.c.b16 %v901, %v900
        %918 = vmatprep.subr.bf16.mxu0 0
        %919 = vmatpush1.bf16.msra.mxu0 %v909
        %920 = vmatprep.subr.bf16.mxu0 0
        %921 = vmatpush1.bf16.msra.mxu0 %v908
        %922 = vmatprep.subr.bf16.mxu0 0
        %923 = vmatpush1.bf16.msra.mxu0 %v907
        %924 = vmatprep.subr.bf16.mxu0 0
        %925 = vmatpush1.bf16.msra.mxu0 %v906
        %926 = vmatprep.subr.bf16.mxu0 0
        %927 = vmatpush1.bf16.msra.mxu0 %v905
        %928 = vmatprep.subr.bf16.mxu0 0
        %929 = vmatpush1.bf16.msra.mxu0 %v904
        %930 = vmatprep.subr.bf16.mxu0 0
        %931 = vmatpush1.bf16.msra.mxu0 %v903
        %932 = vmatprep.subr.bf16.mxu0 0
        %933 = vmatpush1.bf16.msra.mxu0 %v902
        %934 = vmatprep.subr.bf16.mxu0 0
        %935 = vmatpush2.bf16.msra.mxu0 0
        %936 = vmatprep.subr.bf16.mxu0 0
        %937 = vmatpush2.bf16.msra.mxu0 0
        %938 = vmatprep.subr.bf16.mxu0 0
        %939 = vmatpush2.bf16.msra.mxu0 0
        %940 = vmatprep.subr.bf16.mxu0 0
        %941 = vmatpush2.bf16.msra.mxu0 0
        %942 = vmatprep.subr.bf16.mxu0 0
        %943 = vmatpush2.bf16.msra.mxu0 0
        %944 = vmatprep.subr.bf16.mxu0 0
        %945 = vmatpush2.bf16.msra.mxu0 0
        %946 = vmatprep.subr.bf16.mxu0 0
        %947 = vmatpush2.bf16.msra.mxu0 0
        %948 = vmatprep.subr.bf16.mxu0 0
        %949 = vmatpush2.bf16.msra.mxu0 0
        %950 = vmatprep.mubr.bf16.mxu0 0
        %951 = vmatmul.mubr.bf16.gmra.mxu0 %v846
        %v952 = vpop.f32.mrf.mxu0
        %v953 = vadd.f32 %v868, %v952
        %v954 = vpop.f32.mrf.mxu0
        %v955 = vpop.f32.mrf.mxu0
        %v956 = vadd.f32 %v868, %v955
        %v957 = vpop.f32.mrf.mxu0
        %958 = vdwg.mxu0
        %v959 = vld [vmem:[#allocation11] sm:$0xf]
        %v960 = vld [vmem:[#allocation11 + $0x4] sm:$0xf]
        %v961 = vld [vmem:[#allocation11 + $0x8] sm:$0xf]
        %v962 = vld [vmem:[#allocation11 + $0xc] sm:$0xf]
        %v963 = vld [vmem:[#allocation11 + $0x10] sm:$0xf]
        %v964 = vld [vmem:[#allocation11 + $0x14] sm:$0xf]
        %v965 = vld [vmem:[#allocation11 + $0x18] sm:$0xf]
        %v966 = vld [vmem:[#allocation11 + $0x1c] sm:$0xf]
        %v967 = vld [vmem:[%s8] sm:$0x1]
        %v969 = vlaneseq
        %v970 = vshrl.u32 %v969, 7
        %v971 = vsub.s32 0, %v970
        %v972 = vrot.slane %v967, %v971
        %v982 = vunpack.c.l.b16 %v959
        %v983 = vunpack.c.l.b16 %v960
        %v984 = vunpack.c.l.b16 %v961
        %v985 = vunpack.c.l.b16 %v962
        %v986 = vunpack.c.l.b16 %v963
        %v987 = vunpack.c.l.b16 %v964
        %v988 = vunpack.c.l.b16 %v965
        %v989 = vunpack.c.l.b16 %v966
        %v990 = vpack.c.b16 %v983, %v982
        %v991 = vpack.c.b16 %v985, %v984
        %v992 = vpack.c.b16 %v987, %v986
        %v993 = vpack.c.b16 %v989, %v988
        %998 = vmatprep.subr.bf16.mxu0 0
        %999 = vmatpush1.bf16.msra.mxu0 0
        %1000 = vmatprep.subr.bf16.mxu0 0
        %1001 = vmatpush1.bf16.msra.mxu0 0
        %1002 = vmatprep.subr.bf16.mxu0 0
        %1003 = vmatpush1.bf16.msra.mxu0 0
        %1004 = vmatprep.subr.bf16.mxu0 0
        %1005 = vmatpush1.bf16.msra.mxu0 0
        %1006 = vmatprep.subr.bf16.mxu0 0
        %1007 = vmatpush1.bf16.msra.mxu0 %v993
        %1008 = vmatprep.subr.bf16.mxu0 0
        %1009 = vmatpush1.bf16.msra.mxu0 %v992
        %1010 = vmatprep.subr.bf16.mxu0 0
        %1011 = vmatpush1.bf16.msra.mxu0 %v991
        %1012 = vmatprep.subr.bf16.mxu0 0
        %1013 = vmatpush1.bf16.msra.mxu0 %v990
        %1014 = vmatprep.subr.bf16.mxu0 0
        %1015 = vmatpush2.bf16.msra.mxu0 0
        %1016 = vmatprep.subr.bf16.mxu0 0
        %1017 = vmatpush2.bf16.msra.mxu0 0
        %1018 = vmatprep.subr.bf16.mxu0 0
        %1019 = vmatpush2.bf16.msra.mxu0 0
        %1020 = vmatprep.subr.bf16.mxu0 0
        %1021 = vmatpush2.bf16.msra.mxu0 0
        %1022 = vmatprep.subr.bf16.mxu0 0
        %1023 = vmatpush2.bf16.msra.mxu0 0
        %1024 = vmatprep.subr.bf16.mxu0 0
        %1025 = vmatpush2.bf16.msra.mxu0 0
        %1026 = vmatprep.subr.bf16.mxu0 0
        %1027 = vmatpush2.bf16.msra.mxu0 0
        %1028 = vmatprep.subr.bf16.mxu0 0
        %1029 = vmatpush2.bf16.msra.mxu0 0
        %1030 = vmatprep.mubr.bf16.mxu0 0
        %1031 = vmatmul.mubr.bf16.gmra.mxu0 %v458
        %v1032 = vpop.f32.mrf.mxu0
        %v1033 = vadd.f32 %v972, %v1032
        %v1034 = vpop.f32.mrf.mxu0
        %v1035 = vpop.f32.mrf.mxu0
        %v1036 = vadd.f32 %v972, %v1035
        %v1037 = vpop.f32.mrf.mxu0
        %1038 = vdwg.mxu0
        %v1039 = vadd.f32 %v953, %v1033
        %v1040 = vadd.f32 %v956, %v1036
        %v1041 = vmax.f32 %v1039, 0.0
        %v1042 = vmax.f32 %v1040, 0.0
        %1043 = vst [vmem:[%s408] sm:$0xff] %v1041
        %1044 = vst [vmem:[%s408 + $0x8] sm:$0xff] %v1042
        %s1045 = sand.u32 %s230, 1
        %s1046 = scalar_lea.sflag [#allocation5], %s1045
        %s1047 = sand.u32 %s230, 1
        %s1048 = smul.addr %s1047, 16
        %s1049 = scalar_lea.vmem [#allocation12], %s1048
        // Predicated region
        $region77: #{tpu_custom_call.1} parent=55 // pred_check
          %p1050 = pneg %p240
        $region78: #{tpu_custom_call.1} parent=55 // pred_check_branch
          %1052 = sbr.rel (%p1050) target = $region80
        $region79: #{tpu_custom_call.1} parent=55 // pred_region
          %s1054 = ssub.s32 256, 256
          %1055 = vsyncadd %s1046, %s1054
          %s1056 = smul.addr %s28, 2
          %s1057 = smul.addr %s1056, 128
          %s1058 = scalar_lea.hbm %s9, %s1057
          %s1059 = sshll.u32 %s1049, 4
          %s1060 = int_to_ptr.vmem [resolvable:$true] %s1059
          %1065 = dma.vmem_to_hbm [thread:$0]  %s1060, 256, %s1058, %s1046, 128, 128, 8
        $region80: #{tpu_custom_call.1} parent=55 // pred_fallthru
          _
      $region56: #{tpu_custom_call.1} parent=5 // pred_fallthru
        _
      %p1066 = scmp.le.s32.totalorder 2, %s23
      // Predicated region
      $region81: #{tpu_custom_call.1} parent=5 // pred_check
        %p1067 = pneg %p1066
      $region82: #{tpu_custom_call.1} parent=5 // pred_check_branch
        %1069 = sbr.rel (%p1067) target = $region84
      $region83: #{tpu_custom_call.1} parent=5 // pred_region
        %s1070 = ssub.s32 %s23, 2
        // Predicated region
        $region85: #{tpu_custom_call.1} parent=83 // pred_check
          %p1071 = pneg %p246
        $region86: #{tpu_custom_call.1} parent=83 // pred_check_branch
          %1073 = sbr.rel (%p1071) target = $region88
        $region87: #{tpu_custom_call.1} parent=83 // pred_region
          %s1074 = sand.u32 %s231, 1
          %s1075 = scalar_lea.sflag [#allocation5], %s1074
          %s1076 = sand.u32 %s231, 1
          %s1077 = smul.addr %s1076, 16
          %s1078 = scalar_lea.vmem [#allocation12], %s1077
          %1079 = dma.done %s1075, 256
        $region88: #{tpu_custom_call.1} parent=83 // pred_fallthru
          _
      $region84: #{tpu_custom_call.1} parent=5 // pred_fallthru
        _
    $region6: #{tpu_custom_call.1} parent=1 // loop_footer
      %s27 = sadd.s32 1, %s23
    $region7: #{tpu_custom_call.1} parent=1 // loop_footer_branch
      %22 = sbr.rel target = $region3
    $region8: #{tpu_custom_call.1} parent=1 // loop_exit
      _
    %1080 = vsyncpa [#allocation4], 1
    %s1081 = scalar_lea.sflag [#allocation4], 1
    %1082 = vsyncpa %s1081, 1
    %1083 = vsyncpa [#allocation7], 1
    %1084 = vsyncpa [#allocation10], 1
    %1085 = vsyncpa [#allocation5], 1
    %s1086 = scalar_lea.sflag [#allocation5], 1
    %1087 = vsyncpa %s1086, 1

</llo_original>
